<compile_context>
chip_gen: v7x
topology: tpu7x:2x2x1
jax: 0.10.0
libtpu: 0.0.40
codegen_flags: <defaults>
</compile_context>

<pallas_src>
import math
import functools

import jax
import jax.numpy as jnp
from jax import lax
from jax.experimental import pallas as pl
from jax.experimental.pallas import tpu as pltpu

TRIGRAMS = ("qian", "kun", "zhen", "gen", "kan", "li", "xun", "dui")

_LANES = 512                  # lane-dense minor dim (multiple of 128)
_SINGLE_BLOCK_ROWS = 2048     # 2048x512 f32 = 4 MiB per buffer (2 streams)
_FUSED_BLOCK_ROWS = 512       # 512x512  f32 = 1 MiB per buffer (9 streams)
_VMEM_LIMIT_BYTES = 32 * 1024 * 1024   # explicit scoped-VMEM budget, all chips
_INV_SQRT2 = 1.0 / math.sqrt(2.0)


# ---------------------------------------------------------------------------
# Elementwise math (runs inside the kernel on f32 values).
# ---------------------------------------------------------------------------
def _erf_approx(x):
    """erf via Abramowitz & Stegun 7.1.26 (max abs err ~1.5e-7).

    Uses only exp / mul / add / div, so it lowers cleanly in Mosaic and keeps
    the transcendental on the EUP slot (one exp per element).
    """
    ax = jnp.abs(x)
    t = 1.0 / (1.0 + 0.3275911 * ax)
    poly = t * (0.254829592 + t * (-0.284496736 + t * (1.421413741
               + t * (-1.453152027 + t * 1.061405429))))
    y = 1.0 - poly * jnp.exp(-ax * ax)
    return jnp.where(x >= 0.0, y, -y)


def _elu(v):
    # F.elu (alpha=1).  exp(v)-1 instead of expm1: <=1.2e-7 abs error, v<=0.
    return jnp.where(v > 0.0, v, jnp.exp(jnp.minimum(v, 0.0)) - 1.0)


def _gelu_exact(v):
    # F.gelu (erf form) of clamp(v, -5, 5), matching the PyTorch branch.
    c = jnp.clip(v, -5.0, 5.0)
    return 0.5 * c * (1.0 + _erf_approx(c * _INV_SQRT2))


def _softplus(v):
    # F.softplus, numerically stable; log(1+e) with e in (0,1] (no log1p dep).
    return jnp.maximum(v, 0.0) + jnp.log(1.0 + jnp.exp(-jnp.abs(v)))


def _apply_single(v, trigram_name):
    """Elementwise math matching the PyTorch forward branch-for-branch."""
    if trigram_name == "qian":
        return _elu(v) + 0.5 * jnp.tanh(v)
    elif trigram_name == "kun":
        return jax.nn.sigmoid(v)
    elif trigram_name == "zhen":
        return jnp.where(v >= 0.0, v, 0.2 * v)        # F.leaky_relu(x, 0.2)
    elif trigram_name == "gen":
        return _gelu_exact(v)
    elif trigram_name == "kan":
        return jnp.tanh(v)
    elif trigram_name == "li":
        return v * jax.nn.sigmoid(1.2 * v)
    elif trigram_name == "xun":
        return _softplus(v)
    elif trigram_name == "dui":
        return _elu(v) + 0.2 * v
    else:
        return jnp.maximum(v, 0.0)                    # default: relu


# ---------------------------------------------------------------------------
# Kernels
# ---------------------------------------------------------------------------
def _bagua_kernel(x_ref, o_ref, *, trigram_name):
    v = x_ref[...].astype(jnp.float32)        # f32 compute (v5e: no bf16 EUP)
    o_ref[...] = _apply_single(v, trigram_name).astype(o_ref.dtype)


def _bagua_all_kernel(x_ref, *o_refs):
    """Fused kernel: x is read from HBM once per tile, 8 outputs written.

    Each output is stored immediately after it is computed to keep live
    ranges short (8 output streams share the vst slot already).
    """
    v = x_ref[...].astype(jnp.float32)
    o = dict(zip(TRIGRAMS, o_refs))

    elu_v = _elu(v)                                   # shared by qian / dui
    tanh_v = jnp.tanh(v)                              # shared by qian / kan
    o["qian"][...] = (elu_v + 0.5 * tanh_v).astype(o["qian"].dtype)
    o["dui"][...] = (elu_v + 0.2 * v).astype(o["dui"].dtype)
    o["kan"][...] = tanh_v.astype(o["kan"].dtype)
    o["kun"][...] = jax.nn.sigmoid(v).astype(o["kun"].dtype)
    o["zhen"][...] = jnp.where(v >= 0.0, v, 0.2 * v).astype(o["zhen"].dtype)
    o["gen"][...] = _gelu_exact(v).astype(o["gen"].dtype)
    o["li"][...] = (v * jax.nn.sigmoid(1.2 * v)).astype(o["li"].dtype)
    o["xun"][...] = _softplus(v).astype(o["xun"].dtype)


# ---------------------------------------------------------------------------
# Layout helper: lane-dense 2-D view + tiling decision.
# ---------------------------------------------------------------------------
def _prep_lane_dense(x, lanes, max_block_rows):
    """Flatten x into a lane-dense (rows, lanes) slab.

    Pads only up to the next multiple of `lanes` (not to a block multiple);
    the grid uses pl.cdiv so Pallas handles a ragged last block itself.
    Returns (x2d, numel, padded_numel, block_rows, grid).
    """
    flat = x.reshape(-1)
    n = flat.size
    rows = pl.cdiv(n, lanes)
    padded_n = rows * lanes
    if padded_n != n:
        flat = jnp.pad(flat, (0, padded_n - n))   # only the <512-element tail
    x2 = flat.reshape(rows, lanes)
    block_rows = rows if rows <= max_block_rows else max_block_rows
    grid = (pl.cdiv(rows, block_rows),)
    return x2, n, padded_n, block_rows, grid


def _restore(out2, n, padded_n, orig_shape):
    if padded_n == n:
        return out2.reshape(orig_shape)           # free reshape, no copy
    return out2.reshape(-1)[:n].reshape(orig_shape)


# ---------------------------------------------------------------------------
# Public API (Pallas equivalents of BaguaActivations.forward / get_all_...)
# ---------------------------------------------------------------------------
def bagua_activation(x, trigram_name):
    """Pallas equivalent of BaguaActivations.forward(x, trigram_name)."""
    x2, n, padded_n, block_rows, grid = _prep_lane_dense(
        x, _LANES, _SINGLE_BLOCK_ROWS)
    spec = pl.BlockSpec((block_rows, _LANES), lambda i: (i, 0))

    kernel = functools.partial(_bagua_kernel, trigram_name=trigram_name)
    out2 = pl.pallas_call(
        kernel,
        out_shape=jax.ShapeDtypeStruct(x2.shape, x.dtype),
        grid=grid,
        in_specs=[spec],
        out_specs=spec,
        compiler_params=pltpu.CompilerParams(
            dimension_semantics=("parallel",),
            vmem_limit_bytes=_VMEM_LIMIT_BYTES),
    )(x2)
    return _restore(out2, n, padded_n, x.shape)


def get_all_activations(x):
    """Pallas equivalent of BaguaActivations.get_all_activations(x).

    One pallas_call, eight outputs: x is read from HBM once per tile.
    """
    x2, n, padded_n, block_rows, grid = _prep_lane_dense(
        x, _LANES, _FUSED_BLOCK_ROWS)
    spec = pl.BlockSpec((block_rows, _LANES), lambda i: (i, 0))

    outs = pl.pallas_call(
        _bagua_all_kernel,
        out_shape=tuple(
            jax.ShapeDtypeStruct(x2.shape, x.dtype) for _ in TRIGRAMS),
        grid=grid,
        in_specs=[spec],
        out_specs=tuple(spec for _ in TRIGRAMS),
        compiler_params=pltpu.CompilerParams(
            dimension_semantics=("parallel",),
            vmem_limit_bytes=_VMEM_LIMIT_BYTES),
    )(x2)
    return {
        name: _restore(o, n, padded_n, x.shape)
        for name, o in zip(TRIGRAMS, outs)
    }


# ---------------------------------------------------------------------------
# Plain-JAX reference (exact PyTorch math) for sanity checks.
# ---------------------------------------------------------------------------
def _ref_activation(x, name):
    x = x.astype(jnp.float32)
    if name == "qian":
        return jnp.where(x > 0, x, jnp.expm1(x)) + 0.5 * jnp.tanh(x)
    elif name == "kun":
        return jax.nn.sigmoid(x)
    elif name == "zhen":
        return jnp.where(x >= 0, x, 0.2 * x)
    elif name == "gen":
        c = jnp.clip(x, -5.0, 5.0)
        return 0.5 * c * (1.0 + lax.erf(c * _INV_SQRT2))
    elif name == "kan":
        return jnp.tanh(x)
    elif name == "li":
        return x * jax.nn.sigmoid(1.2 * x)
    elif name == "xun":
        return jnp.maximum(x, 0.0) + jnp.log1p(jnp.exp(-jnp.abs(x)))
    elif name == "dui":
        return jnp.where(x > 0, x, jnp.expm1(x)) + 0.2 * x
    else:
        return jnp.maximum(x, 0.0)


if __name__ == "__main__":
    key = jax.random.PRNGKey(0)
    k0, k1, k2, k3 = jax.random.split(key, 4)

    # Primary example: NCHW, matching the PyTorch conv-style input convention.
    x = jax.random.normal(k0, (2, 4, 16, 16), dtype=jnp.float32)

    # Fused kernel (one HBM read, eight outputs) + single-trigram API.
    results = get_all_activations(x)
    results["default"] = bagua_activation(x, "unknown_trigram")

    for name, out in results.items():
        out = jax.block_until_ready(out)
        assert out.shape == x.shape and out.dtype == x.dtype, name

    for name in TRIGRAMS:
        ref = _ref_activation(x, name)
        assert jnp.allclose(results[name], ref, atol=1e-4, rtol=1e-4), name
        single = bagua_activation(x, name)
        assert jnp.allclose(single, ref, atol=1e-4, rtol=1e-4), name
    assert jnp.allclose(results["default"], jnp.maximum(x, 0.0), atol=1e-6)

    # Larger input: exercises the tiled multi-step "parallel" grid path
    # (1024 rows -> fused grid=(2,), single-trigram grid=(1,)).
    xl = jax.random.normal(k1, (8, 16, 64, 64), dtype=jnp.float32)
    fused_l = get_all_activations(xl)
    for name in ("qian", "kan", "xun"):
        assert jnp.allclose(fused_l[name], _ref_activation(xl, name),
                            atol=1e-4, rtol=1e-4), name
    sl = jax.block_until_ready(bagua_activation(xl, "li"))
    assert jnp.allclose(sl, _ref_activation(xl, "li"), atol=1e-4, rtol=1e-4)

    # Ragged last block: 520 rows with a 512-row fused block (grid=(2,)).
    xr = jax.random.normal(k3, (4, 130, 512), dtype=jnp.float32)
    fused_r = get_all_activations(xr)
    for name in ("gen", "dui"):
        assert jnp.allclose(fused_r[name], _ref_activation(xr, name),
                            atol=1e-4, rtol=1e-4), name

    # Odd element count: exercises the lane-tail zero-pad fallback path.
    xo = jax.random.normal(k2, (3, 5, 37, 23), dtype=jnp.float32)
    fused_o = get_all_activations(xo)
    assert jnp.allclose(fused_o["gen"], _ref_activation(xo, "gen"),
                        atol=1e-4, rtol=1e-4)
    so = jax.block_until_ready(bagua_activation(xo, "dui"))
    assert jnp.allclose(so, _ref_activation(xo, "dui"), atol=1e-4, rtol=1e-4)

    print("KERNEL_OK")
</pallas_src>

<mosaic_0001>
module attributes {stable_mosaic.version = 11 : i64} {
  func.func @_bagua_all_kernel(%arg0: i32, %arg1: memref<4x512xf32, #tpu.memory_space<vmem>>, %arg2: memref<4x512xf32, #tpu.memory_space<vmem>>, %arg3: memref<4x512xf32, #tpu.memory_space<vmem>>, %arg4: memref<4x512xf32, #tpu.memory_space<vmem>>, %arg5: memref<4x512xf32, #tpu.memory_space<vmem>>, %arg6: memref<4x512xf32, #tpu.memory_space<vmem>>, %arg7: memref<4x512xf32, #tpu.memory_space<vmem>>, %arg8: memref<4x512xf32, #tpu.memory_space<vmem>>, %arg9: memref<4x512xf32, #tpu.memory_space<vmem>>) attributes {dimension_semantics = [#tpu.dimension_semantics<parallel>], iteration_bounds = array<i64: 1>, scalar_prefetch = 0 : i64, scratch_operands = 0 : i64, tpu.core_type = #tpu.core_type<tc>, window_params = [{transform_indices = @transform_0, window_bounds = array<i64: 4, 512>}, {transform_indices = @transform_1, window_bounds = array<i64: 4, 512>}, {transform_indices = @transform_2, window_bounds = array<i64: 4, 512>}, {transform_indices = @transform_3, window_bounds = array<i64: 4, 512>}, {transform_indices = @transform_4, window_bounds = array<i64: 4, 512>}, {transform_indices = @transform_5, window_bounds = array<i64: 4, 512>}, {transform_indices = @transform_6, window_bounds = array<i64: 4, 512>}, {transform_indices = @transform_7, window_bounds = array<i64: 4, 512>}, {transform_indices = @transform_8, window_bounds = array<i64: 4, 512>}]} {
    %c0 = arith.constant 0 : index
    %c0_0 = arith.constant 0 : index
    %0 = vector.load %arg1[%c0, %c0_0] : memref<4x512xf32, #tpu.memory_space<vmem>>, vector<4x512xf32>
    %cst = arith.constant 0.000000e+00 : f32
    %1 = vector.broadcast %cst : f32 to vector<4x512xf32>
    %2 = arith.cmpf ogt, %0, %1 : vector<4x512xf32>
    %cst_1 = arith.constant 0.000000e+00 : f32
    %3 = vector.broadcast %cst_1 : f32 to vector<4x512xf32>
    %4 = arith.minimumf %0, %3 : vector<4x512xf32>
    %5 = math.exp %4 : vector<4x512xf32>
    %cst_2 = arith.constant 1.000000e+00 : f32
    %6 = vector.broadcast %cst_2 : f32 to vector<4x512xf32>
    %7 = arith.subf %5, %6 : vector<4x512xf32>
    %8 = arith.select %2, %0, %7 : vector<4x512xi1>, vector<4x512xf32>
    %9 = math.tanh %0 : vector<4x512xf32>
    %cst_3 = arith.constant 5.000000e-01 : f32
    %10 = vector.broadcast %cst_3 : f32 to vector<4x512xf32>
    %11 = arith.mulf %10, %9 : vector<4x512xf32>
    %12 = arith.addf %8, %11 : vector<4x512xf32>
    %c0_4 = arith.constant 0 : index
    %c0_5 = arith.constant 0 : index
    %13 = vector.load %arg2[%c0_4, %c0_5] : memref<4x512xf32, #tpu.memory_space<vmem>>, vector<4x512xf32>
    tpu.vector_store %arg2[%c0_4, %c0_5], %12 {strides = array<i32>} : memref<4x512xf32, #tpu.memory_space<vmem>>, vector<4x512xf32>,
    %cst_6 = arith.constant 2.000000e-01 : f32
    %14 = vector.broadcast %cst_6 : f32 to vector<4x512xf32>
    %15 = arith.mulf %14, %0 : vector<4x512xf32>
    %16 = arith.addf %8, %15 : vector<4x512xf32>
    %c0_7 = arith.constant 0 : index
    %c0_8 = arith.constant 0 : index
    %17 = vector.load %arg9[%c0_7, %c0_8] : memref<4x512xf32, #tpu.memory_space<vmem>>, vector<4x512xf32>
    tpu.vector_store %arg9[%c0_7, %c0_8], %16 {strides = array<i32>} : memref<4x512xf32, #tpu.memory_space<vmem>>, vector<4x512xf32>,
    %c0_9 = arith.constant 0 : index
    %c0_10 = arith.constant 0 : index
    %18 = vector.load %arg6[%c0_9, %c0_10] : memref<4x512xf32, #tpu.memory_space<vmem>>, vector<4x512xf32>
    tpu.vector_store %arg6[%c0_9, %c0_10], %9 {strides = array<i32>} : memref<4x512xf32, #tpu.memory_space<vmem>>, vector<4x512xf32>,
    %19 = arith.negf %0 : vector<4x512xf32>
    %20 = math.exp %19 : vector<4x512xf32>
    %cst_11 = arith.constant 1.000000e+00 : f32
    %21 = vector.broadcast %cst_11 : f32 to vector<4x512xf32>
    %22 = arith.addf %21, %20 : vector<4x512xf32>
    %23 = arith.divf %21, %22 : vector<4x512xf32>
    %c0_12 = arith.constant 0 : index
    %c0_13 = arith.constant 0 : index
    %24 = vector.load %arg3[%c0_12, %c0_13] : memref<4x512xf32, #tpu.memory_space<vmem>>, vector<4x512xf32>
    tpu.vector_store %arg3[%c0_12, %c0_13], %23 {strides = array<i32>} : memref<4x512xf32, #tpu.memory_space<vmem>>, vector<4x512xf32>,
    %cst_14 = arith.constant 0.000000e+00 : f32
    %25 = vector.broadcast %cst_14 : f32 to vector<4x512xf32>
    %26 = arith.cmpf oge, %0, %25 : vector<4x512xf32>
    %cst_15 = arith.constant 2.000000e-01 : f32
    %27 = vector.broadcast %cst_15 : f32 to vector<4x512xf32>
    %28 = arith.mulf %27, %0 : vector<4x512xf32>
    %29 = arith.select %26, %0, %28 : vector<4x512xi1>, vector<4x512xf32>
    %c0_16 = arith.constant 0 : index
    %c0_17 = arith.constant 0 : index
    %30 = vector.load %arg4[%c0_16, %c0_17] : memref<4x512xf32, #tpu.memory_space<vmem>>, vector<4x512xf32>
    tpu.vector_store %arg4[%c0_16, %c0_17], %29 {strides = array<i32>} : memref<4x512xf32, #tpu.memory_space<vmem>>, vector<4x512xf32>,
    %cst_18 = arith.constant -5.000000e+00 : f32
    %cst_19 = arith.constant 5.000000e+00 : f32
    %31 = vector.broadcast %cst_18 : f32 to vector<4x512xf32>
    %32 = arith.maximumf %31, %0 : vector<4x512xf32>
    %33 = vector.broadcast %cst_19 : f32 to vector<4x512xf32>
    %34 = arith.minimumf %33, %32 : vector<4x512xf32>
    %cst_20 = arith.constant 5.000000e-01 : f32
    %35 = vector.broadcast %cst_20 : f32 to vector<4x512xf32>
    %36 = arith.mulf %35, %34 : vector<4x512xf32>
    %cst_21 = arith.constant 0.707106769 : f32
    %37 = vector.broadcast %cst_21 : f32 to vector<4x512xf32>
    %38 = arith.mulf %34, %37 : vector<4x512xf32>
    %39 = math.absf %38 : vector<4x512xf32>
    %cst_22 = arith.constant 0.327591091 : f32
    %40 = vector.broadcast %cst_22 : f32 to vector<4x512xf32>
    %41 = arith.mulf %40, %39 : vector<4x512xf32>
    %cst_23 = arith.constant 1.000000e+00 : f32
    %42 = vector.broadcast %cst_23 : f32 to vector<4x512xf32>
    %43 = arith.addf %42, %41 : vector<4x512xf32>
    %cst_24 = arith.constant 1.000000e+00 : f32
    %44 = vector.broadcast %cst_24 : f32 to vector<4x512xf32>
    %45 = arith.divf %44, %43 : vector<4x512xf32>
    %cst_25 = arith.constant 1.06140542 : f32
    %46 = vector.broadcast %cst_25 : f32 to vector<4x512xf32>
    %47 = arith.mulf %45, %46 : vector<4x512xf32>
    %cst_26 = arith.constant -1.45315206 : f32
    %48 = vector.broadcast %cst_26 : f32 to vector<4x512xf32>
    %49 = arith.addf %48, %47 : vector<4x512xf32>
    %50 = arith.mulf %45, %49 : vector<4x512xf32>
    %cst_27 = arith.constant 1.42141378 : f32
    %51 = vector.broadcast %cst_27 : f32 to vector<4x512xf32>
    %52 = arith.addf %51, %50 : vector<4x512xf32>
    %53 = arith.mulf %45, %52 : vector<4x512xf32>
    %cst_28 = arith.constant -0.284496725 : f32
    %54 = vector.broadcast %cst_28 : f32 to vector<4x512xf32>
    %55 = arith.addf %54, %53 : vector<4x512xf32>
    %56 = arith.mulf %45, %55 : vector<4x512xf32>
    %cst_29 = arith.constant 0.254829586 : f32
    %57 = vector.broadcast %cst_29 : f32 to vector<4x512xf32>
    %58 = arith.addf %57, %56 : vector<4x512xf32>
    %59 = arith.mulf %45, %58 : vector<4x512xf32>
    %cst_30 = arith.constant 0.000000e+00 : f32
    %60 = vector.broadcast %cst_30 : f32 to vector<4x512xf32>
    %61 = arith.subf %60, %39 : vector<4x512xf32>
    %62 = arith.mulf %61, %39 : vector<4x512xf32>
    %63 = math.exp %62 : vector<4x512xf32>
    %64 = arith.mulf %59, %63 : vector<4x512xf32>
    %cst_31 = arith.constant 1.000000e+00 : f32
    %65 = vector.broadcast %cst_31 : f32 to vector<4x512xf32>
    %66 = arith.subf %65, %64 : vector<4x512xf32>
    %cst_32 = arith.constant 0.000000e+00 : f32
    %67 = vector.broadcast %cst_32 : f32 to vector<4x512xf32>
    %68 = arith.cmpf oge, %38, %67 : vector<4x512xf32>
    %cst_33 = arith.constant 0.000000e+00 : f32
    %69 = vector.broadcast %cst_33 : f32 to vector<4x512xf32>
    %70 = arith.subf %69, %66 : vector<4x512xf32>
    %71 = arith.select %68, %66, %70 : vector<4x512xi1>, vector<4x512xf32>
    %cst_34 = arith.constant 1.000000e+00 : f32
    %72 = vector.broadcast %cst_34 : f32 to vector<4x512xf32>
    %73 = arith.addf %72, %71 : vector<4x512xf32>
    %74 = arith.mulf %36, %73 : vector<4x512xf32>
    %c0_35 = arith.constant 0 : index
    %c0_36 = arith.constant 0 : index
    %75 = vector.load %arg5[%c0_35, %c0_36] : memref<4x512xf32, #tpu.memory_space<vmem>>, vector<4x512xf32>
    tpu.vector_store %arg5[%c0_35, %c0_36], %74 {strides = array<i32>} : memref<4x512xf32, #tpu.memory_space<vmem>>, vector<4x512xf32>,
    %cst_37 = arith.constant 1.200000e+00 : f32
    %76 = vector.broadcast %cst_37 : f32 to vector<4x512xf32>
    %77 = arith.mulf %76, %0 : vector<4x512xf32>
    %78 = arith.negf %77 : vector<4x512xf32>
    %79 = math.exp %78 : vector<4x512xf32>
    %cst_38 = arith.constant 1.000000e+00 : f32
    %80 = vector.broadcast %cst_38 : f32 to vector<4x512xf32>
    %81 = arith.addf %80, %79 : vector<4x512xf32>
    %82 = arith.divf %80, %81 : vector<4x512xf32>
    %83 = arith.mulf %0, %82 : vector<4x512xf32>
    %c0_39 = arith.constant 0 : index
    %c0_40 = arith.constant 0 : index
    %84 = vector.load %arg7[%c0_39, %c0_40] : memref<4x512xf32, #tpu.memory_space<vmem>>, vector<4x512xf32>
    tpu.vector_store %arg7[%c0_39, %c0_40], %83 {strides = array<i32>} : memref<4x512xf32, #tpu.memory_space<vmem>>, vector<4x512xf32>,
    %cst_41 = arith.constant 0.000000e+00 : f32
    %85 = vector.broadcast %cst_41 : f32 to vector<4x512xf32>
    %86 = arith.maximumf %0, %85 : vector<4x512xf32>
    %87 = math.absf %0 : vector<4x512xf32>
    %cst_42 = arith.constant 0.000000e+00 : f32
    %88 = vector.broadcast %cst_42 : f32 to vector<4x512xf32>
    %89 = arith.subf %88, %87 : vector<4x512xf32>
    %90 = math.exp %89 : vector<4x512xf32>
    %cst_43 = arith.constant 1.000000e+00 : f32
    %91 = vector.broadcast %cst_43 : f32 to vector<4x512xf32>
    %92 = arith.addf %91, %90 : vector<4x512xf32>
    %93 = math.log %92 : vector<4x512xf32>
    %94 = arith.addf %86, %93 : vector<4x512xf32>
    %c0_44 = arith.constant 0 : index
    %c0_45 = arith.constant 0 : index
    %95 = vector.load %arg8[%c0_44, %c0_45] : memref<4x512xf32, #tpu.memory_space<vmem>>, vector<4x512xf32>
    tpu.vector_store %arg8[%c0_44, %c0_45], %94 {strides = array<i32>} : memref<4x512xf32, #tpu.memory_space<vmem>>, vector<4x512xf32>,
    return
  }
  func.func @transform_0(%arg0: i32) -> (i32, i32) {
    %c0_i32 = arith.constant 0 : i32
    %c0_i32_0 = arith.constant 0 : i32
    return %arg0, %c0_i32 : i32, i32
  }
  func.func @transform_1(%arg0: i32) -> (i32, i32) {
    %c0_i32 = arith.constant 0 : i32
    %c0_i32_0 = arith.constant 0 : i32
    return %arg0, %c0_i32 : i32, i32
  }
  func.func @transform_2(%arg0: i32) -> (i32, i32) {
    %c0_i32 = arith.constant 0 : i32
    %c0_i32_0 = arith.constant 0 : i32
    return %arg0, %c0_i32 : i32, i32
  }
  func.func @transform_3(%arg0: i32) -> (i32, i32) {
    %c0_i32 = arith.constant 0 : i32
    %c0_i32_0 = arith.constant 0 : i32
    return %arg0, %c0_i32 : i32, i32
  }
  func.func @transform_4(%arg0: i32) -> (i32, i32) {
    %c0_i32 = arith.constant 0 : i32
    %c0_i32_0 = arith.constant 0 : i32
    return %arg0, %c0_i32 : i32, i32
  }
  func.func @transform_5(%arg0: i32) -> (i32, i32) {
    %c0_i32 = arith.constant 0 : i32
    %c0_i32_0 = arith.constant 0 : i32
    return %arg0, %c0_i32 : i32, i32
  }
  func.func @transform_6(%arg0: i32) -> (i32, i32) {
    %c0_i32 = arith.constant 0 : i32
    %c0_i32_0 = arith.constant 0 : i32
    return %arg0, %c0_i32 : i32, i32
  }
  func.func @transform_7(%arg0: i32) -> (i32, i32) {
    %c0_i32 = arith.constant 0 : i32
    %c0_i32_0 = arith.constant 0 : i32
    return %arg0, %c0_i32 : i32, i32
  }
  func.func @transform_8(%arg0: i32) -> (i32, i32) {
    %c0_i32 = arith.constant 0 : i32
    %c0_i32_0 = arith.constant 0 : i32
    return %arg0, %c0_i32 : i32, i32
  }
}

</mosaic_0001>

<llo_original>
// kernel: tpu_custom_call.1
$region0: #{tpu_custom_call.1}
  #allocation0 [shape = 'u32[]', space=smem, size = 0x4, offset = 0x4, fixed_abs, tag = 'smem constant byte address 0x4 - core index']
  #allocation1 [shape = 'u32[144,128]{1,0:T(1,128)}', space=vmem, size = 0x12000, scoped, tag = 'internal scratch']
  %s0 = inlined_call_operand.hbm [shape: f32[4,512], index: 0, kind: input, shape index: {}]
  %s1 = inlined_call_operand.hbm [shape: f32[4,512], index: 1, kind: output, shape index: {0}]
  %s2 = inlined_call_operand.hbm [shape: f32[4,512], index: 2, kind: output, shape index: {1}]
  %s3 = inlined_call_operand.hbm [shape: f32[4,512], index: 3, kind: output, shape index: {2}]
  %s4 = inlined_call_operand.hbm [shape: f32[4,512], index: 4, kind: output, shape index: {3}]
  %s5 = inlined_call_operand.hbm [shape: f32[4,512], index: 5, kind: output, shape index: {4}]
  %s6 = inlined_call_operand.hbm [shape: f32[4,512], index: 6, kind: output, shape index: {5}]
  %s7 = inlined_call_operand.hbm [shape: f32[4,512], index: 7, kind: output, shape index: {6}]
  %s8 = inlined_call_operand.hbm [shape: f32[4,512], index: 8, kind: output, shape index: {7}]
  %9 = xla_tuple %s1, %s2, %s3, %s4, %s5, %s6, %s7, %s8
  %s10 = sld [smem:[#allocation0]]
  $region74: #{tpu_custom_call.1} parent=0
    _
  %s12 = ssub.s32 1, %s10
  %s13 = scalar_select 0, %s12, %s10
  $region1: #{tpu_custom_call.1} parent=0
    #allocation2 [shape = 'u8[8192]{0}', space=vmem, size = 0x2000, scoped, tag = 'input window, operand 0, single buffered']
    #allocation3 [shape = 's32[1]{0}', space=sflag, size = 0x4, scoped, tag = 'scoped memory for tpu_custom_call.1']
    #allocation4 [shape = 's32[1]{0}', space=sflag, size = 0x4, scoped, tag = 'scoped memory for tpu_custom_call.1']
    #allocation5 [shape = 'u8[8192]{0}', space=vmem, size = 0x2000, scoped, tag = 'output window, operand 0, single buffered']
    #allocation6 [shape = 'u8[8192]{0}', space=vmem, size = 0x2000, scoped, tag = 'output window, operand 1, single buffered']
    #allocation7 [shape = 's32[1]{0}', space=sflag, size = 0x4, scoped, tag = 'scoped memory for tpu_custom_call.1']
    #allocation8 [shape = 'u8[8192]{0}', space=vmem, size = 0x2000, scoped, tag = 'output window, operand 2, single buffered']
    #allocation9 [shape = 'u8[8192]{0}', space=vmem, size = 0x2000, scoped, tag = 'output window, operand 3, single buffered']
    #allocation10 [shape = 's32[1]{0}', space=sflag, size = 0x4, scoped, tag = 'scoped memory for tpu_custom_call.1']
    #allocation11 [shape = 'u8[8192]{0}', space=vmem, size = 0x2000, scoped, tag = 'output window, operand 4, single buffered']
    #allocation12 [shape = 'u8[8192]{0}', space=vmem, size = 0x2000, scoped, tag = 'output window, operand 5, single buffered']
    #allocation13 [shape = 's32[1]{0}', space=sflag, size = 0x4, scoped, tag = 'scoped memory for tpu_custom_call.1']
    #allocation14 [shape = 'u8[8192]{0}', space=vmem, size = 0x2000, scoped, tag = 'output window, operand 6, single buffered']
    #allocation15 [shape = 'u8[8192]{0}', space=vmem, size = 0x2000, scoped, tag = 'output window, operand 7, single buffered']
    #allocation16 [shape = 's32[1]{0}', space=sflag, size = 0x4, scoped, tag = 'scoped memory for tpu_custom_call.1']
    %14 = vsyncpa [#allocation3], 0
    %15 = vsyncpa [#allocation4], 0
    %16 = vsyncpa [#allocation7], 0
    %17 = vsyncpa [#allocation10], 0
    %18 = vsyncpa [#allocation13], 0
    %19 = vsyncpa [#allocation16], 0
    // Predicated region
    $region2: #{tpu_custom_call.1} parent=1 // pred_check
      _
    $region3: #{tpu_custom_call.1} parent=1 // pred_check_branch
      %21 = sbr.rel (0) target = $region5
    $region4: #{tpu_custom_call.1} parent=1 // pred_region
      %s23 = ssub.s32 256, 256
      %24 = vsyncadd [#allocation3], %s23
      %s26 = sshll.u32 [#allocation2], 4
      %s27 = int_to_ptr.vmem [resolvable:$true] %s26
      %29 = dma.hbm_to_vmem [thread:$0]  %s0, 256, %s27, [#allocation3]
    $region5: #{tpu_custom_call.1} parent=1 // pred_fallthru
      _
    // Predicated region
    $region6: #{tpu_custom_call.1} parent=1 // pred_check
      _
    $region7: #{tpu_custom_call.1} parent=1 // pred_check_branch
      %31 = sbr.rel (0) target = $region9
    $region8: #{tpu_custom_call.1} parent=1 // pred_region
      %32 = dma.done [#allocation3], 256
    $region9: #{tpu_custom_call.1} parent=1 // pred_fallthru
      _
    %v33 = vld [vmem:[#allocation2] sm:$0xff]
    %v34 = vld [vmem:[#allocation2 + $0x8] sm:$0xff]
    %vm35 = vcmp.gt.f32.partialorder %v33, 0.0
    %vm36 = vcmp.gt.f32.partialorder %v34, 0.0
    %v37 = vmin.f32 %v33, 0.0
    %v38 = vmin.f32 %v34, 0.0
    %v39 = vmul.f32 %v37, 1.442695
    %v40 = vpow.pop %v39
    %v41 = vmul.f32 %v38, 1.442695
    %v42 = vpow.pop %v41
    %v43 = vsub.f32 %v40, 1.0
    %v44 = vsub.f32 %v42, 1.0
    %v45 = vsel %vm35, %v33, %v43
    %v46 = vsel %vm36, %v34, %v44
    %v47 = vtanh.pop %v33
    %v48 = vtanh.pop %v34
    %v49 = vmul.f32 %v47, 0.5
    %v50 = vmul.f32 %v48, 0.5
    %v51 = vadd.f32 %v45, %v49
    %v52 = vadd.f32 %v46, %v50
    %53 = vst [vmem:[#allocation5] sm:$0xff] %v51
    %54 = vst [vmem:[#allocation5 + $0x8] sm:$0xff] %v52
    %v55 = vmul.f32 %v33, 0.2
    %v56 = vmul.f32 %v34, 0.2
    %v57 = vadd.f32 %v45, %v55
    %v58 = vadd.f32 %v46, %v56
    %59 = vst [vmem:[#allocation15] sm:$0xff] %v57
    %60 = vst [vmem:[#allocation15 + $0x8] sm:$0xff] %v58
    %61 = vst [vmem:[#allocation11] sm:$0xff] %v47
    %62 = vst [vmem:[#allocation11 + $0x8] sm:$0xff] %v48
    %v63 = vxor.u32 %v33, 2147483648
    %v64 = vxor.u32 %v34, 2147483648
    %v65 = vmul.f32 %v63, 1.442695
    %v66 = vpow.pop %v65
    %v67 = vmul.f32 %v64, 1.442695
    %v68 = vpow.pop %v67
    %v69 = vadd.f32 %v66, 1.0
    %v70 = vadd.f32 %v68, 1.0
    %v71 = vrcp.pop %v69
    %v72 = vmul.f32 1.0, %v71
    %v73 = vrcp.pop %v70
    %v74 = vmul.f32 1.0, %v73
    %75 = vst [vmem:[#allocation6] sm:$0xff] %v72
    %76 = vst [vmem:[#allocation6 + $0x8] sm:$0xff] %v74
    %vm77 = vcmp.ge.f32.partialorder %v33, 0.0
    %vm78 = vcmp.ge.f32.partialorder %v34, 0.0
    %v79 = vsel %vm77, %v33, %v55
    %v80 = vsel %vm78, %v34, %v56
    %81 = vst [vmem:[#allocation8] sm:$0xff] %v79
    %82 = vst [vmem:[#allocation8 + $0x8] sm:$0xff] %v80
    %v83 = vmax.f32 %v33, -5.0
    %v84 = vmax.f32 %v34, -5.0
    %v85 = vmin.f32 %v83, 5.0
    %v86 = vmin.f32 %v84, 5.0
    %v87 = vmul.f32 %v85, 0.5
    %v88 = vmul.f32 %v86, 0.5
    %v89 = vmul.f32 %v85, 0.70710677
    %v90 = vmul.f32 %v86, 0.70710677
    %v91 = vand.u32 2147483647, %v89
    %v92 = vand.u32 2147483647, %v90
    %v93 = vmul.f32 %v91, 0.3275911
    %v94 = vmul.f32 %v92, 0.3275911
    %v95 = vadd.f32 %v93, 1.0
    %v96 = vadd.f32 %v94, 1.0
    %v97 = vrcp.pop %v95
    %v98 = vmul.f32 1.0, %v97
    %v99 = vrcp.pop %v96
    %v100 = vmul.f32 1.0, %v99
    %v101 = vmul.f32 %v98, 1.0614054
    %v102 = vmul.f32 %v100, 1.0614054
    %v103 = vadd.f32 %v101, -1.4531521
    %v104 = vadd.f32 %v102, -1.4531521
    %v105 = vmul.f32 %v98, %v103
    %v106 = vmul.f32 %v100, %v104
    %v107 = vadd.f32 %v105, 1.4214138
    %v108 = vadd.f32 %v106, 1.4214138
    %v109 = vmul.f32 %v98, %v107
    %v110 = vmul.f32 %v100, %v108
    %v111 = vadd.f32 %v109, -0.28449672
    %v112 = vadd.f32 %v110, -0.28449672
    %v113 = vmul.f32 %v98, %v111
    %v114 = vmul.f32 %v100, %v112
    %v115 = vadd.f32 %v113, 0.2548296
    %v116 = vadd.f32 %v114, 0.2548296
    %v117 = vmul.f32 %v98, %v115
    %v118 = vmul.f32 %v100, %v116
    %v119 = vsub.f32 0.0, %v91
    %v120 = vsub.f32 0.0, %v92
    %v121 = vmul.f32 %v119, %v91
    %v122 = vmul.f32 %v120, %v92
    %v123 = vmul.f32 %v121, 1.442695
    %v124 = vpow.pop %v123
    %v125 = vmul.f32 %v122, 1.442695
    %v126 = vpow.pop %v125
    %v127 = vmul.f32 %v117, %v124
    %v128 = vmul.f32 %v118, %v126
    %v129 = vsub.f32 1.0, %v127
    %v130 = vsub.f32 1.0, %v128
    %vm131 = vcmp.ge.f32.partialorder %v89, 0.0
    %vm132 = vcmp.ge.f32.partialorder %v90, 0.0
    %v133 = vsub.f32 0.0, %v129
    %v134 = vsub.f32 0.0, %v130
    %v135 = vsel %vm131, %v129, %v133
    %v136 = vsel %vm132, %v130, %v134
    %v137 = vadd.f32 %v135, 1.0
    %v138 = vadd.f32 %v136, 1.0
    %v139 = vmul.f32 %v87, %v137
    %v140 = vmul.f32 %v88, %v138
    %141 = vst [vmem:[#allocation9] sm:$0xff] %v139
    %142 = vst [vmem:[#allocation9 + $0x8] sm:$0xff] %v140
    %v143 = vmul.f32 %v33, 1.2
    %v144 = vmul.f32 %v34, 1.2
    %v145 = vxor.u32 %v143, 2147483648
    %v146 = vxor.u32 %v144, 2147483648
    %v147 = vmul.f32 %v145, 1.442695
    %v148 = vpow.pop %v147
    %v149 = vmul.f32 %v146, 1.442695
    %v150 = vpow.pop %v149
    %v151 = vadd.f32 %v148, 1.0
    %v152 = vadd.f32 %v150, 1.0
    %v153 = vrcp.pop %v151
    %v154 = vmul.f32 1.0, %v153
    %v155 = vrcp.pop %v152
    %v156 = vmul.f32 1.0, %v155
    %v157 = vmul.f32 %v33, %v154
    %v158 = vmul.f32 %v34, %v156
    %159 = vst [vmem:[#allocation12] sm:$0xff] %v157
    %160 = vst [vmem:[#allocation12 + $0x8] sm:$0xff] %v158
    %v161 = vmax.f32 %v33, 0.0
    %v162 = vmax.f32 %v34, 0.0
    %v163 = vand.u32 2147483647, %v33
    %v164 = vand.u32 2147483647, %v34
    %v165 = vsub.f32 0.0, %v163
    %v166 = vsub.f32 0.0, %v164
    %v167 = vmul.f32 %v165, 1.442695
    %v168 = vpow.pop %v167
    %v169 = vmul.f32 %v166, 1.442695
    %v170 = vpow.pop %v169
    %v171 = vadd.f32 %v168, 1.0
    %v172 = vadd.f32 %v170, 1.0
    %v173 = vlog2.pop %v171
    %v174 = vmul.f32 %v173, 0.6931472
    %v175 = vlog2.pop %v172
    %v176 = vmul.f32 %v175, 0.6931472
    %v177 = vadd.f32 %v161, %v174
    %v178 = vadd.f32 %v162, %v176
    %179 = vst [vmem:[#allocation14] sm:$0xff] %v177
    %180 = vst [vmem:[#allocation14 + $0x8] sm:$0xff] %v178
    // Predicated region
    $region10: #{tpu_custom_call.1} parent=1 // pred_check
      _
    $region11: #{tpu_custom_call.1} parent=1 // pred_check_branch
      %182 = sbr.rel (0) target = $region13
    $region12: #{tpu_custom_call.1} parent=1 // pred_region
      %s184 = ssub.s32 256, 256
      %185 = vsyncadd [#allocation4], %s184
      %s187 = sshll.u32 [#allocation5], 4
      %s188 = int_to_ptr.vmem [resolvable:$true] %s187
      %190 = dma.vmem_to_hbm [thread:$0]  %s188, 256, %s1, [#allocation4]
    $region13: #{tpu_custom_call.1} parent=1 // pred_fallthru
      _
    // Predicated region
    $region14: #{tpu_custom_call.1} parent=1 // pred_check
      _
    $region15: #{tpu_custom_call.1} parent=1 // pred_check_branch
      %192 = sbr.rel (0) target = $region17
    $region16: #{tpu_custom_call.1} parent=1 // pred_region
      %s194 = ssub.s32 256, 256
      %195 = vsyncadd [#allocation7], %s194
      %s197 = sshll.u32 [#allocation6], 4
      %s198 = int_to_ptr.vmem [resolvable:$true] %s197
      %200 = dma.vmem_to_hbm [thread:$0]  %s198, 256, %s2, [#allocation7]
    $region17: #{tpu_custom_call.1} parent=1 // pred_fallthru
      _
    // Predicated region
    $region18: #{tpu_custom_call.1} parent=1 // pred_check
      _
    $region19: #{tpu_custom_call.1} parent=1 // pred_check_branch
      %202 = sbr.rel (0) target = $region21
    $region20: #{tpu_custom_call.1} parent=1 // pred_region
      %s204 = ssub.s32 256, 256
      %205 = vsyncadd [#allocation7], %s204
      %s207 = sshll.u32 [#allocation8], 4
      %s208 = int_to_ptr.vmem [resolvable:$true] %s207
      %210 = dma.vmem_to_hbm [thread:$0]  %s208, 256, %s3, [#allocation7]
    $region21: #{tpu_custom_call.1} parent=1 // pred_fallthru
      _
    // Predicated region
    $region22: #{tpu_custom_call.1} parent=1 // pred_check
      _
    $region23: #{tpu_custom_call.1} parent=1 // pred_check_branch
      %212 = sbr.rel (0) target = $region25
    $region24: #{tpu_custom_call.1} parent=1 // pred_region
      %s214 = ssub.s32 256, 256
      %215 = vsyncadd [#allocation10], %s214
      %s217 = sshll.u32 [#allocation9], 4
      %s218 = int_to_ptr.vmem [resolvable:$true] %s217
      %220 = dma.vmem_to_hbm [thread:$0]  %s218, 256, %s4, [#allocation10]
    $region25: #{tpu_custom_call.1} parent=1 // pred_fallthru
      _
    // Predicated region
    $region26: #{tpu_custom_call.1} parent=1 // pred_check
      _
    $region27: #{tpu_custom_call.1} parent=1 // pred_check_branch
      %222 = sbr.rel (0) target = $region29
    $region28: #{tpu_custom_call.1} parent=1 // pred_region
      %s224 = ssub.s32 256, 256
      %225 = vsyncadd [#allocation10], %s224
      %s227 = sshll.u32 [#allocation11], 4
      %s228 = int_to_ptr.vmem [resolvable:$true] %s227
      %230 = dma.vmem_to_hbm [thread:$0]  %s228, 256, %s5, [#allocation10]
    $region29: #{tpu_custom_call.1} parent=1 // pred_fallthru
      _
    // Predicated region
    $region30: #{tpu_custom_call.1} parent=1 // pred_check
      _
    $region31: #{tpu_custom_call.1} parent=1 // pred_check_branch
      %232 = sbr.rel (0) target = $region33
    $region32: #{tpu_custom_call.1} parent=1 // pred_region
      %s234 = ssub.s32 256, 256
      %235 = vsyncadd [#allocation13], %s234
      %s237 = sshll.u32 [#allocation12], 4
      %s238 = int_to_ptr.vmem [resolvable:$true] %s237
      %240 = dma.vmem_to_hbm [thread:$0]  %s238, 256, %s6, [#allocation13]
    $region33: #{tpu_custom_call.1} parent=1 // pred_fallthru
      _
    // Predicated region
    $region34: #{tpu_custom_call.1} parent=1 // pred_check
      _
    $region35: #{tpu_custom_call.1} parent=1 // pred_check_branch
      %242 = sbr.rel (0) target = $region37
    $region36: #{tpu_custom_call.1} parent=1 // pred_region
      %s244 = ssub.s32 256, 256
      %245 = vsyncadd [#allocation13], %s244
      %s247 = sshll.u32 [#allocation14], 4
      %s248 = int_to_ptr.vmem [resolvable:$true] %s247
      %250 = dma.vmem_to_hbm [thread:$0]  %s248, 256, %s7, [#allocation13]
    $region37: #{tpu_custom_call.1} parent=1 // pred_fallthru
      _
    // Predicated region
    $region38: #{tpu_custom_call.1} parent=1 // pred_check
      _
    $region39: #{tpu_custom_call.1} parent=1 // pred_check_branch
      %252 = sbr.rel (0) target = $region41
    $region40: #{tpu_custom_call.1} parent=1 // pred_region
      %s254 = ssub.s32 256, 256
      %255 = vsyncadd [#allocation16], %s254
      %s257 = sshll.u32 [#allocation15], 4
      %s258 = int_to_ptr.vmem [resolvable:$true] %s257
      %260 = dma.vmem_to_hbm [thread:$0]  %s258, 256, %s8, [#allocation16]
    $region41: #{tpu_custom_call.1} parent=1 // pred_fallthru
      _
    // Predicated region
    $region42: #{tpu_custom_call.1} parent=1 // pred_check
      _
    $region43: #{tpu_custom_call.1} parent=1 // pred_check_branch
      %262 = sbr.rel (0) target = $region45
    $region44: #{tpu_custom_call.1} parent=1 // pred_region
      %263 = dma.done [#allocation4], 256
    $region45: #{tpu_custom_call.1} parent=1 // pred_fallthru
      _
    // Predicated region
    $region46: #{tpu_custom_call.1} parent=1 // pred_check
      _
    $region47: #{tpu_custom_call.1} parent=1 // pred_check_branch
      %265 = sbr.rel (0) target = $region49
    $region48: #{tpu_custom_call.1} parent=1 // pred_region
      %266 = dma.done [#allocation7], 256
    $region49: #{tpu_custom_call.1} parent=1 // pred_fallthru
      _
    // Predicated region
    $region50: #{tpu_custom_call.1} parent=1 // pred_check
      _
    $region51: #{tpu_custom_call.1} parent=1 // pred_check_branch
      %268 = sbr.rel (0) target = $region53
    $region52: #{tpu_custom_call.1} parent=1 // pred_region
      %269 = dma.done [#allocation7], 256
    $region53: #{tpu_custom_call.1} parent=1 // pred_fallthru
      _
    // Predicated region
    $region54: #{tpu_custom_call.1} parent=1 // pred_check
      _
    $region55: #{tpu_custom_call.1} parent=1 // pred_check_branch
      %271 = sbr.rel (0) target = $region57
    $region56: #{tpu_custom_call.1} parent=1 // pred_region
      %272 = dma.done [#allocation10], 256
    $region57: #{tpu_custom_call.1} parent=1 // pred_fallthru
      _
    // Predicated region
    $region58: #{tpu_custom_call.1} parent=1 // pred_check
      _
    $region59: #{tpu_custom_call.1} parent=1 // pred_check_branch
      %274 = sbr.rel (0) target = $region61
    $region60: #{tpu_custom_call.1} parent=1 // pred_region
      %275 = dma.done [#allocation10], 256
    $region61: #{tpu_custom_call.1} parent=1 // pred_fallthru
      _
    // Predicated region
    $region62: #{tpu_custom_call.1} parent=1 // pred_check
      _
    $region63: #{tpu_custom_call.1} parent=1 // pred_check_branch
      %277 = sbr.rel (0) target = $region65
    $region64: #{tpu_custom_call.1} parent=1 // pred_region
      %278 = dma.done [#allocation13], 256
    $region65: #{tpu_custom_call.1} parent=1 // pred_fallthru
      _
    // Predicated region
    $region66: #{tpu_custom_call.1} parent=1 // pred_check
      _
    $region67: #{tpu_custom_call.1} parent=1 // pred_check_branch
      %280 = sbr.rel (0) target = $region69
    $region68: #{tpu_custom_call.1} parent=1 // pred_region
      %281 = dma.done [#allocation13], 256
    $region69: #{tpu_custom_call.1} parent=1 // pred_fallthru
      _
    // Predicated region
    $region70: #{tpu_custom_call.1} parent=1 // pred_check
      _
    $region71: #{tpu_custom_call.1} parent=1 // pred_check_branch
      %283 = sbr.rel (0) target = $region73
    $region72: #{tpu_custom_call.1} parent=1 // pred_region
      %284 = dma.done [#allocation16], 256
    $region73: #{tpu_custom_call.1} parent=1 // pred_fallthru
      _
    %285 = vsyncpa [#allocation3], 1
    %286 = vsyncpa [#allocation4], 1
    %287 = vsyncpa [#allocation7], 1
    %288 = vsyncpa [#allocation10], 1
    %289 = vsyncpa [#allocation13], 1
    %290 = vsyncpa [#allocation16], 1

</llo_original>
